<compile_context>
chip_gen: v6e
topology: v6e:2x2x1
jax: 0.10.0
libtpu: 0.0.40
codegen_flags: <defaults>
</compile_context>

<pallas_src>
import functools

import jax
import jax.numpy as jnp
from jax.experimental import pallas as pl
from jax.experimental.pallas import tpu as pltpu


def _rmsnorm_kernel(x_ref, wb_ref, o_ref, *, eps):
    # x_ref: (TR, H) tile; wb_ref: (2, H) f32 -> row 0 = weight, row 1 = bias
    xf = x_ref[...].astype(jnp.float32)
    ms = jnp.mean(xf * xf, axis=-1, keepdims=True)      # lane reduce -> XLU
    inv = jax.lax.rsqrt(ms + eps)                        # EUP rsqrt (free slot)
    # Match reference: normalized value is cast back to the input dtype before the
    # scale/shift (xf.type_as(x)), then scaled/shifted; single cast at the store.
    xn = (xf * inv).astype(o_ref.dtype).astype(jnp.float32)
    w = wb_ref[0:1, :]
    b = wb_ref[1:2, :]
    o_ref[...] = (w * xn + b).astype(o_ref.dtype)


def _round_up(x, m):
    return (x + m - 1) // m * m


def _round_down(x, m):
    return (x // m) * m


def mlp_speculator_layer_norm(x, weight, bias, eps=1e-6, *, tile_rows=None):
    """x: (..., H). L2-normalizes over the last axis, scales by weight, shifts by bias."""
    orig_shape = x.shape
    H = orig_shape[-1]
    x2 = x.reshape(-1, H)
    R = x2.shape[0]

    itemsize = jnp.dtype(x.dtype).itemsize
    # Sublane packing: f32 -> 8 rows/vreg, bf16 -> 16, int8/fp8 -> 32.
    row_align = 8 * max(1, 4 // itemsize)

    if tile_rows is None:
        # Target ~2 MiB of x per grid step.  With x-in + out double-buffered that is
        # ~8 MiB of VMEM, comfortably inside even v7x's 64 MiB while amortizing the
        # per-grid-step overhead.
        target_tile_bytes = 2 * 1024 * 1024
        tr = _round_down(target_tile_bytes // max(1, H * itemsize), row_align)
        tr = max(row_align, tr)
        # Don't make the tile larger than the (rounded-up) problem.
        tile_rows = min(tr, _round_up(R, row_align))
    else:
        tile_rows = max(row_align, _round_up(int(tile_rows), row_align))

    grid = (pl.cdiv(R, tile_rows),)  # ragged last block: OOB output writes are masked

    # Pack weight/bias into one (2, H) f32 block: one constant-index, VMEM-resident DMA.
    wb = jnp.stack(
        [weight.reshape(H).astype(jnp.float32), bias.reshape(H).astype(jnp.float32)],
        axis=0,
    )

    # Explicit VMEM budget: x tile + out tile, double-buffered, plus the tiny wb block.
    tile_bytes = 2 * tile_rows * H * itemsize            # x,  2 buffers
    tile_bytes += 2 * tile_rows * H * itemsize           # out, 2 buffers
    tile_bytes += 2 * 2 * H * 4                          # wb, 2 buffers (f32)
    vmem_limit = int(min(max(2 * tile_bytes, 16 << 20), 48 << 20))

    out = pl.pallas_call(
        functools.partial(_rmsnorm_kernel, eps=eps),
        out_shape=jax.ShapeDtypeStruct((R, H), x.dtype),
        grid=grid,
        in_specs=[
            pl.BlockSpec((tile_rows, H), lambda i: (i, 0)),
            pl.BlockSpec((2, H), lambda i: (0, 0)),
        ],
        out_specs=pl.BlockSpec((tile_rows, H), lambda i: (i, 0)),
        compiler_params=pltpu.CompilerParams(
            dimension_semantics=("parallel",),   # lets v7x shard row blocks across its 2 TCs
            vmem_limit_bytes=vmem_limit,
        ),
    )(x2, wb)

    return out.reshape(orig_shape)


def _reference(x, weight, bias, eps=1e-6):
    xf = x.astype(jnp.float32)
    xf = xf * jax.lax.rsqrt(jnp.mean(xf * xf, axis=-1, keepdims=True) + eps)
    xn = xf.astype(x.dtype)
    return (weight * xn + bias).astype(x.dtype)


# TODO(synk): inside a full MLPSpeculator block this norm should be fused into the
# adjacent matmul's Pallas kernel (apply on the output tile before writeback) to save
# one full HBM read+write pass; as a standalone op it is HBM-bound by design.

if __name__ == "__main__":
    key = jax.random.PRNGKey(0)
    k1, k2, k3, k4 = jax.random.split(key, 4)

    batch, seq, hidden = 2, 8, 128   # normalized_shape = hidden
    x = jax.random.normal(k1, (batch, seq, hidden), dtype=jnp.float32)
    weight = jax.random.normal(k2, (hidden,), dtype=jnp.float32)
    bias = jax.random.normal(k3, (hidden,), dtype=jnp.float32)

    out = mlp_speculator_layer_norm(x, weight, bias, eps=1e-6)
    jax.block_until_ready(out)
    ref = _reference(x, weight, bias, eps=1e-6)
    assert out.shape == x.shape
    assert jnp.allclose(out, ref, atol=1e-5, rtol=1e-5), "mismatch vs reference (main)"

    # Ragged-row test: R=15 is not a multiple of the forced 8-row tile (exercises the
    # cdiv grid / masked last block path — no wrapper pad or slice).
    x_r = jax.random.normal(k4, (3, 5, hidden), dtype=jnp.float32)
    out_r = mlp_speculator_layer_norm(x_r, weight, bias, eps=1e-6, tile_rows=8)
    jax.block_until_ready(out_r)
    ref_r = _reference(x_r, weight, bias, eps=1e-6)
    assert out_r.shape == x_r.shape
    assert jnp.allclose(out_r, ref_r, atol=1e-5, rtol=1e-5), "mismatch vs reference (ragged)"

    print("KERNEL_OK")
</pallas_src>

<mosaic_0001>
module attributes {stable_mosaic.version = 11 : i64} {
  func.func @_rmsnorm_kernel(%arg0: i32, %arg1: memref<16x128xf32, #tpu.memory_space<vmem>>, %arg2: memref<2x128xf32, #tpu.memory_space<vmem>>, %arg3: memref<16x128xf32, #tpu.memory_space<vmem>>) attributes {dimension_semantics = [#tpu.dimension_semantics<parallel>], iteration_bounds = array<i64: 1>, scalar_prefetch = 0 : i64, scratch_operands = 0 : i64, tpu.core_type = #tpu.core_type<tc>, window_params = [{transform_indices = @transform_0, window_bounds = array<i64: 16, 128>}, {pipeline_mode = #tpu.pipeline_mode<synchronous>, transform_indices = @transform_1, window_bounds = array<i64: 2, 128>}, {transform_indices = @transform_2, window_bounds = array<i64: 16, 128>}]} {
    %c0 = arith.constant 0 : index
    %c0_0 = arith.constant 0 : index
    %0 = vector.load %arg1[%c0, %c0_0] : memref<16x128xf32, #tpu.memory_space<vmem>>, vector<16x128xf32>
    %1 = arith.mulf %0, %0 : vector<16x128xf32>
    %cst = arith.constant dense<0.000000e+00> : vector<16xf32>
    %2 = vector.multi_reduction <add>, %1, %cst [1] : vector<16x128xf32> to vector<16xf32>
    %3 = vector.shape_cast %2 : vector<16xf32> to vector<16x1xf32>
    %cst_1 = arith.constant 1.280000e+02 : f32
    %4 = vector.broadcast %cst_1 : f32 to vector<16x1xf32>
    %5 = arith.divf %3, %4 : vector<16x1xf32>
    %cst_2 = arith.constant 9.99999997E-7 : f32
    %6 = vector.broadcast %cst_2 : f32 to vector<16x1xf32>
    %7 = arith.addf %5, %6 : vector<16x1xf32>
    %8 = math.rsqrt %7 : vector<16x1xf32>
    %9 = vector.broadcast %8 : vector<16x1xf32> to vector<16x128xf32>
    %10 = arith.mulf %0, %9 : vector<16x128xf32>
    %c0_3 = arith.constant 0 : index
    %c0_4 = arith.constant 0 : index
    %11 = vector.load %arg2[%c0_3, %c0_4] : memref<2x128xf32, #tpu.memory_space<vmem>>, vector<1x128xf32>
    %c1 = arith.constant 1 : index
    %c0_5 = arith.constant 0 : index
    %12 = vector.load %arg2[%c1, %c0_5] : memref<2x128xf32, #tpu.memory_space<vmem>>, vector<1x128xf32>
    %13 = vector.broadcast %11 : vector<1x128xf32> to vector<16x128xf32>
    %14 = arith.mulf %13, %10 : vector<16x128xf32>
    %15 = vector.broadcast %12 : vector<1x128xf32> to vector<16x128xf32>
    %16 = arith.addf %14, %15 : vector<16x128xf32>
    %c0_6 = arith.constant 0 : index
    %c0_7 = arith.constant 0 : index
    %17 = vector.load %arg3[%c0_6, %c0_7] : memref<16x128xf32, #tpu.memory_space<vmem>>, vector<16x128xf32>
    tpu.vector_store %arg3[%c0_6, %c0_7], %16 {strides = array<i32>} : memref<16x128xf32, #tpu.memory_space<vmem>>, vector<16x128xf32>,
    return
  }
  func.func @transform_0(%arg0: i32) -> (i32, i32) {
    %c0_i32 = arith.constant 0 : i32
    %c0_i32_0 = arith.constant 0 : i32
    return %arg0, %c0_i32 : i32, i32
  }
  func.func @transform_1(%arg0: i32) -> (i32, i32) {
    %c0_i32 = arith.constant 0 : i32
    %c0_i32_0 = arith.constant 0 : i32
    %c0_i32_1 = arith.constant 0 : i32
    return %c0_i32, %c0_i32_0 : i32, i32
  }
  func.func @transform_2(%arg0: i32) -> (i32, i32) {
    %c0_i32 = arith.constant 0 : i32
    %c0_i32_0 = arith.constant 0 : i32
    return %arg0, %c0_i32 : i32, i32
  }
}

</mosaic_0001>

<llo_original>
// kernel: tpu_custom_call.1
$region0: #{tpu_custom_call.1}
  #allocation0 [shape = 'u32[]', space=smem, size = 0x4, offset = 0x4, fixed_abs, tag = 'smem constant byte address 0x4 - core index']
  #allocation1 [shape = 'u32[144,128]{1,0:T(1,128)}', space=vmem, size = 0x12000, scoped, tag = 'internal scratch']
  %s0 = inlined_call_operand.hbm [shape: f32[16,128], index: 0, kind: input, shape index: {}]
  %s1 = inlined_call_operand.hbm [shape: f32[2,128], index: 1, kind: input, shape index: {}]
  %s2 = inlined_call_operand.hbm [shape: f32[16,128], index: 2, kind: output, shape index: {}]
  %s3 = sld [smem:[#allocation0]]
  $region26: #{tpu_custom_call.1} parent=0
    _
  %s5 = ssub.s32 1, %s3
  %s6 = scalar_select 0, %s5, %s3
  $region1: #{tpu_custom_call.1} parent=0
    #allocation2 [shape = 'u8[8192]{0}', space=vmem, size = 0x2000, scoped, tag = 'input window, operand 0, single buffered']
    #allocation3 [shape = 's32[1]{0}', space=sflag, size = 0x4, scoped, tag = 'scoped memory for tpu_custom_call.1']
    #allocation4 [shape = 's32[1]{0}', space=sflag, size = 0x4, scoped, tag = 'scoped memory for tpu_custom_call.1']
    #allocation5 [shape = 'u8[1024]{0}', space=vmem, size = 0x400, scoped, tag = 'input window, operand 1, single buffered']
    #allocation6 [shape = 's32[1]{0}', space=sflag, size = 0x4, scoped, tag = 'scoped memory for tpu_custom_call.1']
    #allocation7 [shape = 'u8[8192]{0}', space=vmem, size = 0x2000, scoped, tag = 'output window, operand 0, single buffered']
    %7 = vsyncpa [#allocation3], 0
    %8 = vsyncpa [#allocation6], 0
    %9 = vsyncpa [#allocation4], 0
    // Predicated region
    $region2: #{tpu_custom_call.1} parent=1 // pred_check
      _
    $region3: #{tpu_custom_call.1} parent=1 // pred_check_branch
      %11 = sbr.rel (0) target = $region5
    $region4: #{tpu_custom_call.1} parent=1 // pred_region
      %s13 = ssub.s32 256, 256
      %14 = vsyncadd [#allocation3], %s13
      %s15 = sshll.u32 [#allocation2], 4
      %s16 = int_to_ptr.vmem [resolvable:$true] %s15
      %21 = dma.hbm_to_vmem [thread:$0]  %s0, 256, %s16, [#allocation3], 128, 128, 8
    $region5: #{tpu_custom_call.1} parent=1 // pred_fallthru
      _
    // Predicated region
    $region6: #{tpu_custom_call.1} parent=1 // pred_check
      _
    $region7: #{tpu_custom_call.1} parent=1 // pred_check_branch
      %23 = sbr.rel (0) target = $region9
    $region8: #{tpu_custom_call.1} parent=1 // pred_region
      %s25 = ssub.s32 32, 32
      %26 = vsyncadd [#allocation6], %s25
      %s28 = sshll.u32 [#allocation5], 4
      %s29 = int_to_ptr.vmem [resolvable:$true] %s28
      %31 = dma.hbm_to_vmem [thread:$0]  %s1, 32, %s29, [#allocation6]
    $region9: #{tpu_custom_call.1} parent=1 // pred_fallthru
      _
    // Predicated region
    $region10: #{tpu_custom_call.1} parent=1 // pred_check
      _
    $region11: #{tpu_custom_call.1} parent=1 // pred_check_branch
      %33 = sbr.rel (0) target = $region13
    $region12: #{tpu_custom_call.1} parent=1 // pred_region
      %34 = dma.done [#allocation3], 256
    $region13: #{tpu_custom_call.1} parent=1 // pred_fallthru
      _
    // Predicated region
    $region14: #{tpu_custom_call.1} parent=1 // pred_check
      _
    $region15: #{tpu_custom_call.1} parent=1 // pred_check_branch
      %36 = sbr.rel (0) target = $region17
    $region16: #{tpu_custom_call.1} parent=1 // pred_region
      %37 = dma.done [#allocation6], 32
    $region17: #{tpu_custom_call.1} parent=1 // pred_fallthru
      _
    %v38 = vld [vmem:[#allocation2] sm:$0xff]
    %v39 = vld [vmem:[#allocation2 + $0x8] sm:$0xff]
    %v40 = vmul.f32 %v38, %v38
    %v41 = vmul.f32 %v39, %v39
    %42 = vadd.xlane.f32.xlu0 %v40
    %v43 = vpop.xlane.xlu0 %42
    %44 = vadd.xlane.f32.xlu0 %v41
    %v45 = vpop.xlane.xlu0 %44
    %v46 = vrcp.pop 128.0
    %v47 = vmul.f32 %v43, %v46
    %v48 = vmul.f32 %v45, %v46
    %v49 = vadd.f32 %v47, 1e-06
    %v50 = vadd.f32 %v48, 1e-06
    %v51 = vrsqrt.pop %v49
    %v52 = vrsqrt.pop %v50
    %v53 = vmul.f32 %v38, %v51
    %v54 = vmul.f32 %v39, %v52
    %v55 = vld [vmem:[#allocation5] sm:$0x1]
    %v56 = vld [vmem:[#allocation5 + $0x1] sm:$0x1]
    %v57 = vlaneseq
    %v58 = vshrl.u32 %v57, 7
    %v59 = vsub.s32 0, %v58
    %v60 = vrot.slane %v55, %v59
    %v61 = vmul.f32 %v60, %v53
    %v62 = vmul.f32 %v60, %v54
    %v63 = vlaneseq
    %v64 = vshrl.u32 %v63, 7
    %v65 = vsub.s32 0, %v64
    %v66 = vrot.slane %v56, %v65
    %v67 = vadd.f32 %v61, %v66
    %v68 = vadd.f32 %v62, %v66
    %69 = vst [vmem:[#allocation7] sm:$0xff] %v67
    %70 = vst [vmem:[#allocation7 + $0x8] sm:$0xff] %v68
    // Predicated region
    $region18: #{tpu_custom_call.1} parent=1 // pred_check
      _
    $region19: #{tpu_custom_call.1} parent=1 // pred_check_branch
      %72 = sbr.rel (0) target = $region21
    $region20: #{tpu_custom_call.1} parent=1 // pred_region
      %s74 = ssub.s32 256, 256
      %75 = vsyncadd [#allocation4], %s74
      %s76 = sshll.u32 [#allocation7], 4
      %s77 = int_to_ptr.vmem [resolvable:$true] %s76
      %82 = dma.vmem_to_hbm [thread:$0]  %s77, 256, %s2, [#allocation4], 128, 128, 8
    $region21: #{tpu_custom_call.1} parent=1 // pred_fallthru
      _
    // Predicated region
    $region22: #{tpu_custom_call.1} parent=1 // pred_check
      _
    $region23: #{tpu_custom_call.1} parent=1 // pred_check_branch
      %84 = sbr.rel (0) target = $region25
    $region24: #{tpu_custom_call.1} parent=1 // pred_region
      %85 = dma.done [#allocation4], 256
    $region25: #{tpu_custom_call.1} parent=1 // pred_fallthru
      _
    %86 = vsyncpa [#allocation3], 1
    %87 = vsyncpa [#allocation6], 1
    %88 = vsyncpa [#allocation4], 1

</llo_original>
